<compile_context>
chip_gen: v7x
topology: tpu7x:2x2x1
jax: 0.10.0
libtpu: 0.0.40
codegen_flags: <defaults>
</compile_context>

<pallas_src>
import functools

import jax
import jax.numpy as jnp
import numpy as np
from jax.experimental import pallas as pl
from jax.experimental.pallas import tpu as pltpu


# -------------------- VMEM budget (per TPU generation) ---------------------------------

_VMEM_LIMIT_CACHE = None
_MAX_CHUNK_STEPS = 16          # in-kernel unroll depth of the recurrence per grid step


def _vmem_limit_bytes():
    """~80% of physical VMEM (128 MiB on v5e/v6e, 64 MiB on v7x), capped at 112 MiB."""
    global _VMEM_LIMIT_CACHE
    if _VMEM_LIMIT_CACHE is None:
        cap = 64 * 1024 * 1024
        try:
            cap = int(getattr(pltpu.get_tpu_info(), "vmem_capacity_bytes", cap))
        except Exception:
            pass
        _VMEM_LIMIT_CACHE = min((cap * 4) // 5, 112 * 1024 * 1024)
    return _VMEM_LIMIT_CACHE


# -------------------- time-parallel projection kernel (also the final embedding) -------

def _proj_kernel(*refs):
    """o = sum_p x[p] @ w[p] + b.

    refs = (x_0, ..., x_{P-1}, w, b, o):
      x_p: (Nt, Din) bf16    w: (P, Din, G) bf16    b: (1, G) f32    o: (Nt, G)
    """
    *x_refs, w_ref, b_ref, o_ref = refs
    acc = jnp.dot(x_refs[0][...], w_ref[0], preferred_element_type=jnp.float32)
    for p in range(1, len(x_refs)):
        acc = acc + jnp.dot(x_refs[p][...], w_ref[p], preferred_element_type=jnp.float32)
    o_ref[...] = (acc + b_ref[...]).astype(o_ref.dtype)     # (1, G) broadcasts over rows


def _pick_row_tile(n_rows, per_row_bytes, resident_bytes, vmem_limit):
    budget = max(vmem_limit - resident_bytes, vmem_limit // 4)
    tile = budget // max(2 * per_row_bytes, 1)               # row blocks are double-buffered
    if tile >= n_rows:
        return n_rows                                        # full-array block: always legal
    return max(16, (tile // 16) * 16)                        # sublane-dense for bf16


def time_parallel_projection(x_parts, w_parts, bias, out_dtype):
    """[x_p: (N, Din)] x (P, Din, G) -> (N, G), tiled over the flattened T*B row dim."""
    n_parts = len(x_parts)
    n_rows, d_in = x_parts[0].shape
    g = w_parts.shape[-1]
    vmem_limit = _vmem_limit_bytes()
    per_row = n_parts * d_in * x_parts[0].dtype.itemsize + g * jnp.dtype(out_dtype).itemsize
    resident = 2 * (w_parts.size * w_parts.dtype.itemsize + bias.size * 4)
    tile_n = _pick_row_tile(n_rows, per_row, resident, vmem_limit)
    in_specs = ([pl.BlockSpec((tile_n, d_in), lambda i: (i, 0)) for _ in range(n_parts)]
                + [pl.BlockSpec((n_parts, d_in, g), lambda i: (0, 0, 0)),
                   pl.BlockSpec((1, g), lambda i: (0, 0))])
    return pl.pallas_call(
        _proj_kernel,
        out_shape=jax.ShapeDtypeStruct((n_rows, g), out_dtype),
        grid=(pl.cdiv(n_rows, tile_n),),
        in_specs=in_specs,
        out_specs=pl.BlockSpec((tile_n, g), lambda i: (i, 0)),
        compiler_params=pltpu.CompilerParams(
            dimension_semantics=("parallel",),
            vmem_limit_bytes=vmem_limit),
    )(*x_parts, w_parts, bias)


# -------------------- fused bidirectional recurrence kernel ----------------------------

def _birnn_kernel(gxf_ref, gxb_ref, whh_ref, yf_ref, yb_ref, carry_ref, *,
                  hidden, batch, chunk_t):
    """Both LSTM directions over one time chunk; only h @ W_hh sits on the serial path.

    gxf_ref / gxb_ref: (chunk_t*B, 4H) bf16 precomputed x@W_ih + b (fwd / time-mirrored bwd)
    whh_ref:           (2, H, 4H) bf16
    yf_ref / yb_ref:   (chunk_t*B, H) bf16 output blocks
    carry_ref:         (4, B, H) f32 VMEM scratch: h_fwd, c_fwd, h_bwd, c_bwd (persists
                       across grid steps; reset at chunk 0)
    """
    H = hidden

    @pl.when(pl.program_id(0) == 0)
    def _():
        carry_ref[...] = jnp.zeros_like(carry_ref)

    whh_f = whh_ref[0]
    whh_b = whh_ref[1]
    h_f = carry_ref[0]
    c_f = carry_ref[1]
    h_b = carry_ref[2]
    c_b = carry_ref[3]

    # One bulk f32 cast per chunk; every per-step slice below is static (free).
    gxf = gxf_ref[...].astype(jnp.float32)
    gxb = gxb_ref[...].astype(jnp.float32)

    def cell(gates, c):
        # Gate columns are packed as [i | f | o | g]: one wide sigmoid + one tanh pass.
        ifo = jax.nn.sigmoid(gates[:, :3 * H])
        g = jnp.tanh(gates[:, 3 * H:])
        i, f, o = ifo[:, :H], ifo[:, H:2 * H], ifo[:, 2 * H:]
        c_new = f * c + i * g
        return o * jnp.tanh(c_new), c_new

    # Statically unrolled chunk walk: fwd top->bottom, bwd bottom->top (the bwd block is
    # already the mirrored time chunk via its index_map).  The two directions are
    # independent, so their matmul/EUP chains interleave on a single TensorCore.
    for s in range(chunk_t):
        rf = s * batch
        rb = (chunk_t - 1 - s) * batch
        g_f = gxf[rf:rf + batch] + jnp.dot(h_f.astype(whh_f.dtype), whh_f,
                                           preferred_element_type=jnp.float32)
        g_b = gxb[rb:rb + batch] + jnp.dot(h_b.astype(whh_b.dtype), whh_b,
                                           preferred_element_type=jnp.float32)
        h_f, c_f = cell(g_f, c_f)
        h_b, c_b = cell(g_b, c_b)
        yf_ref[rf:rf + batch, :] = h_f.astype(yf_ref.dtype)
        yb_ref[rb:rb + batch, :] = h_b.astype(yb_ref.dtype)

    carry_ref[0] = h_f
    carry_ref[1] = c_f
    carry_ref[2] = h_b
    carry_ref[3] = c_b


def _pick_time_chunk(seq_len, batch, hidden, vmem_limit):
    """Largest divisor of T whose row count (chunk*B) is 16-aligned, fits the VMEM row
    budget, and keeps the unrolled body compact."""
    step_bytes = batch * (8 * hidden + 2 * hidden) * 2 * 2   # bf16 gate + y blocks, 2-buffered
    max_steps = min(_MAX_CHUNK_STEPS, max(1, (vmem_limit // 2) // max(step_bytes, 1)))
    cands = [c for c in range(1, seq_len + 1)
             if seq_len % c == 0 and (c * batch) % 16 == 0 and c <= max_steps]
    if cands:
        return max(cands)
    # Fallback (odd tiny shapes): keep the whole sequence resident; a full-array block
    # is always layout-legal.
    return seq_len


def bidir_recurrence(gates_x, whh_stack, hidden, seq_len, batch):
    """gates_x: (T*B, 8H) = [fwd 4H | bwd 4H] columns -> (y_fwd, y_bwd), each (T*B, H)."""
    n_rows = gates_x.shape[0]
    assert n_rows == seq_len * batch
    assert (4 * hidden) % 128 == 0, "need 4*H to be a lane-aligned multiple of 128"
    vmem_limit = _vmem_limit_bytes()
    chunk_t = _pick_time_chunk(seq_len, batch, hidden, vmem_limit)
    num_chunks = seq_len // chunk_t
    rows = chunk_t * batch
    kernel = functools.partial(_birnn_kernel, hidden=hidden, batch=batch, chunk_t=chunk_t)
    y_shape = jax.ShapeDtypeStruct((n_rows, hidden), jnp.bfloat16)
    return pl.pallas_call(
        kernel,
        out_shape=(y_shape, y_shape),
        grid=(num_chunks,),
        in_specs=[
            pl.BlockSpec((rows, 4 * hidden), lambda k: (k, 0)),                    # fwd gates
            pl.BlockSpec((rows, 4 * hidden), lambda k: (num_chunks - 1 - k, 1)),   # bwd gates
            pl.BlockSpec((2, hidden, 4 * hidden), lambda k: (0, 0, 0)),            # W_hh
        ],
        out_specs=(
            pl.BlockSpec((rows, hidden), lambda k: (k, 0)),
            pl.BlockSpec((rows, hidden), lambda k: (num_chunks - 1 - k, 0)),
        ),
        scratch_shapes=[pltpu.VMEM((4, batch, hidden), jnp.float32)],
        compiler_params=pltpu.CompilerParams(
            dimension_semantics=("arbitrary",),       # carry lives across time chunks
            vmem_limit_bytes=vmem_limit),
    )(gates_x, gates_x, whh_stack)


# -------------------- full forward pass -------------------------------------------------

def mlayer_lstm_forward(x, packed):
    """x: (T, B, nIn) f32 -> (T, B, nClass) f32."""
    T, B, n_in = x.shape
    n_rows = T * B
    # Flatten (T, B) into one sublane-dense row dim; activations travel as bf16.
    parts = [x.reshape(n_rows, n_in).astype(jnp.bfloat16)]
    for (w_in_parts, bias_in, whh_stack) in packed["lstm"]:
        H = whh_stack.shape[1]
        gates_x = time_parallel_projection(parts, w_in_parts, bias_in, jnp.bfloat16)
        y_fwd, y_bwd = bidir_recurrence(gates_x, whh_stack, H, T, B)
        parts = [y_fwd, y_bwd]
        # TODO(synk): nn.LSTM inter-layer dropout omitted (inference semantics).
    w_emb_parts, b_emb_pad, n_class = packed["emb"]
    out_pad = time_parallel_projection(parts, w_emb_parts, b_emb_pad, jnp.float32)
    return out_pad[:, :n_class].reshape(T, B, n_class)


# -------------------- parameter packing (PyTorch-style -> kernel layout) ----------------

def _reorder_gate_cols(w, H):
    """LSTM gate column order [i|f|g|o] -> kernel order [i|f|o|g]."""
    return jnp.concatenate([w[..., :2 * H], w[..., 3 * H:], w[..., 2 * H:3 * H]], axis=-1)


def pack_params(raw):
    packed = {"lstm": []}
    for layer, ((wih_f, whh_f, b_f), (wih_b, whh_b, b_b)) in enumerate(raw["lstm"]):
        H = whh_f.shape[0]
        wih_f, whh_f, b_f = (_reorder_gate_cols(a, H) for a in (wih_f, whh_f, b_f))
        wih_b, whh_b, b_b = (_reorder_gate_cols(a, H) for a in (wih_b, whh_b, b_b))
        w_in = jnp.concatenate([wih_f, wih_b], axis=1)                 # (d_in, 8H) [fwd|bwd]
        bias = jnp.concatenate([b_f, b_b], axis=1).astype(jnp.float32)  # (1, 8H)
        if layer == 0:
            w_parts = w_in[None]                                       # (1, nIn, 8H)
        else:   # previous layer feeds [y_fwd, y_bwd] as two parts -> split rows
            w_parts = jnp.stack([w_in[:H], w_in[H:]], axis=0)          # (2, H, 8H)
        whh_stack = jnp.stack([whh_f, whh_b], axis=0)                  # (2, H, 4H)
        packed["lstm"].append((w_parts.astype(jnp.bfloat16), bias,
                               whh_stack.astype(jnp.bfloat16)))
    w_emb, b_emb = raw["emb"]
    two_h, n_class = w_emb.shape
    H = two_h // 2
    c_pad = ((n_class + 127) // 128) * 128            # lane-dense padded output width
    w_pad = jnp.zeros((two_h, c_pad), jnp.float32).at[:, :n_class].set(w_emb)
    b_pad = jnp.zeros((1, c_pad), jnp.float32).at[:, :n_class].set(b_emb)
    w_emb_parts = jnp.stack([w_pad[:H], w_pad[H:]], axis=0)            # (2, H, Cpad)
    packed["emb"] = (w_emb_parts.astype(jnp.bfloat16), b_pad, n_class)
    return packed


# -------------------- pure-JAX f32 reference ---------------------------------------------

def _lstm_dir_ref(x, wih, whh, b, H):
    def step(carry, xt):
        h, c = carry
        gates = xt @ wih + h @ whh + b[0]
        i = jax.nn.sigmoid(gates[:, 0 * H:1 * H])
        f = jax.nn.sigmoid(gates[:, 1 * H:2 * H])
        g = jnp.tanh(gates[:, 2 * H:3 * H])
        o = jax.nn.sigmoid(gates[:, 3 * H:4 * H])
        c = f * c + i * g
        h = o * jnp.tanh(c)
        return (h, c), h
    Bsz = x.shape[1]
    init = (jnp.zeros((Bsz, H), jnp.float32), jnp.zeros((Bsz, H), jnp.float32))
    _, ys = jax.lax.scan(step, init, x)
    return ys


def mlayer_lstm_ref(x, params):
    h = x
    for (wih_f, whh_f, b_f), (wih_b, whh_b, b_b) in params["lstm"]:
        H = whh_f.shape[0]
        y_fwd = _lstm_dir_ref(h, wih_f, whh_f, b_f, H)
        y_bwd = _lstm_dir_ref(h[::-1], wih_b, whh_b, b_b, H)[::-1]
        h = jnp.concatenate([y_fwd, y_bwd], axis=-1)
    T_, B_, HH = h.shape
    w_emb, b_emb = params["emb"]
    out = h.reshape(T_ * B_, HH) @ w_emb + b_emb[0]
    return out.reshape(T_, B_, -1)


# -------------------- parameter init ------------------------------------------------------

def init_params(key, n_in, n_hidden, n_layer, n_class):
    initrange = 0.08
    params = {"lstm": []}
    for layer in range(n_layer):
        d_in = n_in if layer == 0 else 2 * n_hidden
        dirs = []
        for _ in range(2):  # forward, backward
            key, k1, k2, k3 = jax.random.split(key, 4)
            w_ih = jax.random.uniform(k1, (d_in, 4 * n_hidden), jnp.float32,
                                      -initrange, initrange)
            w_hh = jax.random.uniform(k2, (n_hidden, 4 * n_hidden), jnp.float32,
                                      -initrange, initrange)
            # b_ih + b_hh combined into one bias row.
            bias = jax.random.uniform(k3, (1, 4 * n_hidden), jnp.float32,
                                      -2 * initrange, 2 * initrange)
            dirs.append((w_ih, w_hh, bias))
        params["lstm"].append(tuple(dirs))
    key, k1, k2 = jax.random.split(key, 3)
    bound = 1.0 / np.sqrt(2 * n_hidden)           # PyTorch default Linear init range
    w_emb = jax.random.uniform(k1, (2 * n_hidden, n_class), jnp.float32, -bound, bound)
    b_emb = jax.random.uniform(k2, (1, n_class), jnp.float32, -bound, bound)
    params["emb"] = (w_emb, b_emb)
    return params


# -------------------- main ----------------------------------------------------------------

if __name__ == "__main__":
    n_in, n_hidden, n_layer, n_class = 16, 32, 2, 10
    T, B = 32, 2        # T=32 exercises the chunked-carry recurrence grid (2 chunks of 16)

    key = jax.random.PRNGKey(0)
    key, kx = jax.random.split(key)
    x = jax.random.normal(kx, (T, B, n_in), jnp.float32)     # (T, b, nIn) time-major
    raw_params = init_params(key, n_in, n_hidden, n_layer, n_class)
    packed_params = pack_params(raw_params)

    out = jax.block_until_ready(mlayer_lstm_forward(x, packed_params))
    ref = jax.block_until_ready(mlayer_lstm_ref(x, raw_params))

    assert out.shape == (T, B, n_class), out.shape
    # Kernel path stores weights/activations in bf16 (f32 MXU accumulation, f32 h/c
    # carries); the tolerance covers bf16 quantisation vs the pure-f32 reference.
    np.testing.assert_allclose(np.asarray(out), np.asarray(ref), atol=3e-2, rtol=3e-2)

    print("KERNEL_OK")
</pallas_src>

<mosaic_0001>
module attributes {stable_mosaic.version = 11 : i64} {
  func.func @_proj_kernel(%arg0: i32, %arg1: memref<64x16xbf16, #tpu.memory_space<vmem>>, %arg2: memref<1x16x256xbf16, #tpu.memory_space<vmem>>, %arg3: memref<1x256xf32, #tpu.memory_space<vmem>>, %arg4: memref<64x256xbf16, #tpu.memory_space<vmem>>) attributes {dimension_semantics = [#tpu.dimension_semantics<parallel>], iteration_bounds = array<i64: 1>, scalar_prefetch = 0 : i64, scratch_operands = 0 : i64, tpu.core_type = #tpu.core_type<tc>, window_params = [{transform_indices = @transform_0, window_bounds = array<i64: 64, 16>}, {pipeline_mode = #tpu.pipeline_mode<synchronous>, transform_indices = @transform_1, window_bounds = array<i64: 1, 16, 256>}, {pipeline_mode = #tpu.pipeline_mode<synchronous>, transform_indices = @transform_2, window_bounds = array<i64: 1, 256>}, {transform_indices = @transform_3, window_bounds = array<i64: 64, 256>}]} {
    %c0 = arith.constant 0 : index
    %c0_0 = arith.constant 0 : index
    %0 = vector.load %arg1[%c0, %c0_0] : memref<64x16xbf16, #tpu.memory_space<vmem>>, vector<64x16xbf16>
    %c0_1 = arith.constant 0 : index
    %c0_2 = arith.constant 0 : index
    %c0_3 = arith.constant 0 : index
    %1 = vector.load %arg2[%c0_1, %c0_2, %c0_3] : memref<1x16x256xbf16, #tpu.memory_space<vmem>>, vector<1x16x256xbf16>
    %2 = vector.shape_cast %1 : vector<1x16x256xbf16> to vector<16x256xbf16>
    %cst = arith.constant dense<0.000000e+00> : vector<64x256xf32>
    %3 = tpu.matmul %0, %2, %cst {dimension_numbers = #tpu.dot_dimension_numbers<[1], [0], [0], [1], [0, 0, 1, 1], [], []>} : vector<64x16xbf16>, vector<16x256xbf16>, vector<64x256xf32> -> vector<64x256xf32>
    %c0_4 = arith.constant 0 : index
    %c0_5 = arith.constant 0 : index
    %4 = vector.load %arg3[%c0_4, %c0_5] : memref<1x256xf32, #tpu.memory_space<vmem>>, vector<1x256xf32>
    %5 = vector.broadcast %4 : vector<1x256xf32> to vector<64x256xf32>
    %6 = arith.addf %3, %5 : vector<64x256xf32>
    %7 = arith.truncf %6 : vector<64x256xf32> to vector<64x256xbf16>
    %c0_6 = arith.constant 0 : index
    %c0_7 = arith.constant 0 : index
    %8 = vector.load %arg4[%c0_6, %c0_7] : memref<64x256xbf16, #tpu.memory_space<vmem>>, vector<64x256xbf16>
    tpu.vector_store %arg4[%c0_6, %c0_7], %7 {strides = array<i32>} : memref<64x256xbf16, #tpu.memory_space<vmem>>, vector<64x256xbf16>,
    return
  }
  func.func @transform_0(%arg0: i32) -> (i32, i32) {
    %c0_i32 = arith.constant 0 : i32
    %c0_i32_0 = arith.constant 0 : i32
    return %arg0, %c0_i32 : i32, i32
  }
  func.func @transform_1(%arg0: i32) -> (i32, i32, i32) {
    %c0_i32 = arith.constant 0 : i32
    %c0_i32_0 = arith.constant 0 : i32
    %c0_i32_1 = arith.constant 0 : i32
    %c0_i32_2 = arith.constant 0 : i32
    return %c0_i32, %c0_i32_0, %c0_i32_1 : i32, i32, i32
  }
  func.func @transform_2(%arg0: i32) -> (i32, i32) {
    %c0_i32 = arith.constant 0 : i32
    %c0_i32_0 = arith.constant 0 : i32
    %c0_i32_1 = arith.constant 0 : i32
    return %c0_i32, %c0_i32_0 : i32, i32
  }
  func.func @transform_3(%arg0: i32) -> (i32, i32) {
    %c0_i32 = arith.constant 0 : i32
    %c0_i32_0 = arith.constant 0 : i32
    return %arg0, %c0_i32 : i32, i32
  }
}

</mosaic_0001>

<llo_original>
// kernel: tpu_custom_call.1
$region0: #{tpu_custom_call.1}
  #allocation0 [shape = 'u32[]', space=smem, size = 0x4, offset = 0x4, fixed_abs, tag = 'smem constant byte address 0x4 - core index']
  #allocation1 [shape = 'u32[144,128]{1,0:T(1,128)}', space=vmem, size = 0x12000, scoped, tag = 'internal scratch']
  %s0 = inlined_call_operand.vmem [shape: bf16[64,16], index: 0, kind: input, shape index: {}]
  %s1 = inlined_call_operand.vmem [shape: bf16[1,16,256], index: 1, kind: input, shape index: {}]
  %s2 = inlined_call_operand.vmem [shape: f32[1,256], index: 2, kind: input, shape index: {}]
  %s3 = inlined_call_operand.hbm [shape: bf16[64,256], index: 3, kind: output, shape index: {}]
  %s4 = sld [smem:[#allocation0]]
  $region22: #{tpu_custom_call.1} parent=0
    _
  %s6 = ssub.s32 1, %s4
  %s7 = scalar_select 0, %s6, %s4
  $region1: #{tpu_custom_call.1} parent=0
    #allocation2 [shape = 'u8[32768]{0}', space=vmem, size = 0x8000, scoped, tag = 'output window, operand 0, single buffered']
    #allocation3 [shape = 's32[1]{0}', space=sflag, size = 0x4, scoped, tag = 'scoped memory for tpu_custom_call.1']
    %8 = vsyncpa [#allocation3], 0
    // Predicated region
    $region2: #{tpu_custom_call.1} parent=1 // pred_check
      _
    $region3: #{tpu_custom_call.1} parent=1 // pred_check_branch
      %10 = sbr.rel (0) target = $region5
    $region4: #{tpu_custom_call.1} parent=1 // pred_region
      _
    $region5: #{tpu_custom_call.1} parent=1 // pred_fallthru
      _
    // Predicated region
    $region6: #{tpu_custom_call.1} parent=1 // pred_check
      _
    $region7: #{tpu_custom_call.1} parent=1 // pred_check_branch
      %12 = sbr.rel (0) target = $region9
    $region8: #{tpu_custom_call.1} parent=1 // pred_region
      _
    $region9: #{tpu_custom_call.1} parent=1 // pred_fallthru
      _
    // Predicated region
    $region10: #{tpu_custom_call.1} parent=1 // pred_check
      _
    $region11: #{tpu_custom_call.1} parent=1 // pred_check_branch
      %14 = sbr.rel (0) target = $region13
    $region12: #{tpu_custom_call.1} parent=1 // pred_region
      _
    $region13: #{tpu_custom_call.1} parent=1 // pred_fallthru
      _
    %v16 = vld [vmem:[%s0] sm:$0xf]
    %v17 = vld [vmem:[%s0 + $0x4] sm:$0xf]
    %v18 = vld [vmem:[%s0 + $0x8] sm:$0xf]
    %v19 = vld [vmem:[%s0 + $0xc] sm:$0xf]
    %v20 = vld [vmem:[%s0 + $0x10] sm:$0xf]
    %v21 = vld [vmem:[%s0 + $0x14] sm:$0xf]
    %v22 = vld [vmem:[%s0 + $0x18] sm:$0xf]
    %v23 = vld [vmem:[%s0 + $0x1c] sm:$0xf]
    %v24 = vld [vmem:[%s1] sm:$0xff]
    %v25 = vld [vmem:[%s1 + $0x8] sm:$0xff]
    %v26 = vld [vmem:[%s2] sm:$0x3]
    %v28 = vlaneseq
    %v29 = vshrl.u32 %v28, 7
    %v30 = vsub.s32 0, %v29
    %v31 = vrot.slane %v26, %v30
    %v32 = vlaneseq
    %v33 = vshrl.u32 %v32, 7
    %v34 = vsub.s32 1, %v33
    %v35 = vrot.slane %v26, %v34
    %v46 = vunpack.c.l.b16 %v16
    %v47 = vunpack.c.l.b16 %v17
    %v48 = vunpack.c.l.b16 %v18
    %v49 = vunpack.c.l.b16 %v19
    %v50 = vunpack.c.l.b16 %v20
    %v51 = vunpack.c.l.b16 %v21
    %v52 = vunpack.c.l.b16 %v22
    %v53 = vunpack.c.l.b16 %v23
    %v54 = vpack.c.b16 %v47, %v46
    %v55 = vpack.c.b16 %v49, %v48
    %v56 = vpack.c.b16 %v51, %v50
    %v57 = vpack.c.b16 %v53, %v52
    %v60 = vunpack.c.l.b16 %v24
    %v61 = vunpack.c.h.b16 %v24
    %v62 = vunpack.c.l.b16 %v25
    %v63 = vunpack.c.h.b16 %v25
    %v64 = vpack.c.b16 %v62, %v60
    %v65 = vpack.c.b16 %v63, %v61
    %vm68 = vcmask 130048
    %v70 = vsel %vm68, %v54, 0
    %v73 = vsel %vm68, %v55, 0
    %v76 = vsel %vm68, %v56, 0
    %v79 = vsel %vm68, %v57, 0
    %81 = vmatprep.subr.bf16.mxu0 %v65
    %82 = vmatpush1.bf16.msra.mxu0 %v64
    %83 = vmatprep.subr.bf16.mxu0 0
    %84 = vmatpush1.bf16.msra.mxu0 0
    %85 = vmatprep.subr.bf16.mxu0 0
    %86 = vmatpush1.bf16.msra.mxu0 0
    %87 = vmatprep.subr.bf16.mxu0 0
    %88 = vmatpush1.bf16.msra.mxu0 0
    %89 = vmatprep.subr.bf16.mxu0 0
    %90 = vmatpush1.bf16.msra.mxu0 0
    %91 = vmatprep.subr.bf16.mxu0 0
    %92 = vmatpush1.bf16.msra.mxu0 0
    %93 = vmatprep.subr.bf16.mxu0 0
    %94 = vmatpush1.bf16.msra.mxu0 0
    %95 = vmatprep.subr.bf16.mxu0 0
    %96 = vmatpush1.bf16.msra.mxu0 0
    %97 = vmatprep.subr.bf16.mxu0 0
    %98 = vmatpush1.bf16.msra.mxu0 0
    %99 = vmatprep.subr.bf16.mxu0 0
    %100 = vmatpush1.bf16.msra.mxu0 0
    %101 = vmatprep.subr.bf16.mxu0 0
    %102 = vmatpush1.bf16.msra.mxu0 0
    %103 = vmatprep.subr.bf16.mxu0 0
    %104 = vmatpush1.bf16.msra.mxu0 0
    %105 = vmatprep.subr.bf16.mxu0 0
    %106 = vmatpush1.bf16.msra.mxu0 0
    %107 = vmatprep.subr.bf16.mxu0 0
    %108 = vmatpush1.bf16.msra.mxu0 0
    %109 = vmatprep.subr.bf16.mxu0 0
    %110 = vmatpush1.bf16.msra.mxu0 0
    %111 = vmatprep.subr.bf16.mxu0 0
    %112 = vmatpush1.bf16.msra.mxu0 0
    %113 = vmatprep.mubr.bf16.mxu0 0
    %114 = vmatmul.mubr.bf16.gmra.mrb[0].mxu0 %v70
    %v115 = vpop.f32.mrb[0].mxu0
    %v116 = vadd.f32 %v31, %v115
    %v117 = vpop.f32.mrb[0].mxu0
    %v118 = vadd.f32 %v35, %v117
    %v119 = vpop.f32.mrb[0].mxu0
    %v120 = vadd.f32 %v31, %v119
    %v121 = vpop.f32.mrb[0].mxu0
    %v122 = vadd.f32 %v35, %v121
    %123 = vmatprep.mubr.bf16.mxu0 0
    %124 = vmatmul.mubr.bf16.gmra.mrb[0].mxu0 %v73
    %v125 = vpop.f32.mrb[0].mxu0
    %v126 = vadd.f32 %v31, %v125
    %v127 = vpop.f32.mrb[0].mxu0
    %v128 = vadd.f32 %v35, %v127
    %v129 = vpop.f32.mrb[0].mxu0
    %v130 = vadd.f32 %v31, %v129
    %v131 = vpop.f32.mrb[0].mxu0
    %v132 = vadd.f32 %v35, %v131
    %133 = vmatprep.mubr.bf16.mxu0 0
    %134 = vmatmul.mubr.bf16.gmra.mrb[0].mxu0 %v76
    %v135 = vpop.f32.mrb[0].mxu0
    %v136 = vadd.f32 %v31, %v135
    %v137 = vpop.f32.mrb[0].mxu0
    %v138 = vadd.f32 %v35, %v137
    %v139 = vpop.f32.mrb[0].mxu0
    %v140 = vadd.f32 %v31, %v139
    %v141 = vpop.f32.mrb[0].mxu0
    %v142 = vadd.f32 %v35, %v141
    %143 = vmatprep.mubr.bf16.mxu0 0
    %144 = vmatmul.mubr.bf16.gmra.mrb[0].mxu0 %v79
    %v145 = vpop.f32.mrb[0].mxu0
    %v146 = vadd.f32 %v31, %v145
    %v147 = vpop.f32.mrb[0].mxu0
    %v148 = vadd.f32 %v35, %v147
    %v149 = vpop.f32.mrb[0].mxu0
    %v150 = vadd.f32 %v31, %v149
    %v151 = vpop.f32.mrb[0].mxu0
    %v152 = vadd.f32 %v35, %v151
    %153 = vdwg.mxu0
    %v154 = vpack.c.bf16 %v120, %v116
    %v155 = vpack.c.bf16 %v122, %v118
    %v156 = vpack.c.bf16 %v130, %v126
    %v157 = vpack.c.bf16 %v132, %v128
    %v158 = vpack.c.bf16 %v140, %v136
    %v159 = vpack.c.bf16 %v142, %v138
    %v160 = vpack.c.bf16 %v150, %v146
    %v161 = vpack.c.bf16 %v152, %v148
    %v170 = vunpack.c.l.b16 %v154
    %v171 = vunpack.c.l.b16 %v155
    %v172 = vunpack.c.h.b16 %v154
    %v173 = vunpack.c.h.b16 %v155
    %v174 = vunpack.c.l.b16 %v156
    %v175 = vunpack.c.l.b16 %v157
    %v176 = vunpack.c.h.b16 %v156
    %v177 = vunpack.c.h.b16 %v157
    %v178 = vunpack.c.l.b16 %v158
    %v179 = vunpack.c.l.b16 %v159
    %v180 = vunpack.c.h.b16 %v158
    %v181 = vunpack.c.h.b16 %v159
    %v182 = vunpack.c.l.b16 %v160
    %v183 = vunpack.c.l.b16 %v161
    %v184 = vunpack.c.h.b16 %v160
    %v185 = vunpack.c.h.b16 %v161
    %v186 = vpack.c.b16 %v171, %v170
    %v187 = vpack.c.b16 %v173, %v172
    %v188 = vpack.c.b16 %v175, %v174
    %v189 = vpack.c.b16 %v177, %v176
    %v190 = vpack.c.b16 %v179, %v178
    %v191 = vpack.c.b16 %v181, %v180
    %v192 = vpack.c.b16 %v183, %v182
    %v193 = vpack.c.b16 %v185, %v184
    %202 = vst [vmem:[#allocation2] sm:$0xff] %v186
    %203 = vst [vmem:[#allocation2 + $0x8] sm:$0xff] %v187
    %204 = vst [vmem:[#allocation2 + $0x10] sm:$0xff] %v188
    %205 = vst [vmem:[#allocation2 + $0x18] sm:$0xff] %v189
    %206 = vst [vmem:[#allocation2 + $0x20] sm:$0xff] %v190
    %207 = vst [vmem:[#allocation2 + $0x28] sm:$0xff] %v191
    %208 = vst [vmem:[#allocation2 + $0x30] sm:$0xff] %v192
    %209 = vst [vmem:[#allocation2 + $0x38] sm:$0xff] %v193
    // Predicated region
    $region14: #{tpu_custom_call.1} parent=1 // pred_check
      _
    $region15: #{tpu_custom_call.1} parent=1 // pred_check_branch
      %211 = sbr.rel (0) target = $region17
    $region16: #{tpu_custom_call.1} parent=1 // pred_region
      %s213 = ssub.s32 1024, 1024
      %214 = vsyncadd [#allocation3], %s213
      %s215 = sshll.u32 [#allocation2], 4
      %s216 = int_to_ptr.vmem [resolvable:$true] %s215
      %221 = dma.vmem_to_hbm [thread:$0]  %s216, 1024, %s3, [#allocation3], 128, 128, 8
    $region17: #{tpu_custom_call.1} parent=1 // pred_fallthru
      _
    // Predicated region
    $region18: #{tpu_custom_call.1} parent=1 // pred_check
      _
    $region19: #{tpu_custom_call.1} parent=1 // pred_check_branch
      %223 = sbr.rel (0) target = $region21
    $region20: #{tpu_custom_call.1} parent=1 // pred_region
      %224 = dma.done [#allocation3], 1024
    $region21: #{tpu_custom_call.1} parent=1 // pred_fallthru
      _
    %225 = vsyncpa [#allocation3], 1

</llo_original>
